<compile_context>
chip_gen: v5e
topology: v5e:2x2
jax: 0.10.0
libtpu: 0.0.40
codegen_flags: <defaults>
</compile_context>

<pallas_src>
import numpy as np
import jax
import jax.numpy as jnp
from jax.experimental import pallas as pl
from jax.experimental.pallas import tpu as pltpu


def _pick_query_tile(Q):
    """Largest tile (multiple of 8, <=512) dividing Q; else the full Q (full-dim block is legal)."""
    if Q % 8 == 0:
        for t in (512, 256, 128, 64, 32, 16, 8):
            if Q % t == 0:
                return t
    return Q


def _make_criterion_kernel(*, B, Q, C, TQ, QT, M, Mpad, focal_alpha):
    inv_M = 100.0 / float(max(M, 1))     # class_error guard for M == 0 (reference returns 100)
    inv_B = 1.0 / float(B)
    one_m_alpha = 1.0 - focal_alpha

    def sig_and_logterm(x):
        # 2 transcendentals per element (EUP: tanh + log), everything else VALU.
        #   sig      = sigmoid(x)            = 0.5 * (1 + tanh(x/2))
        #   log_term = log(1 + exp(-|x|))    = -log(sigmoid(|x|)) = -log(max(sig, 1-sig))
        sig = 0.5 * (jnp.tanh(0.5 * x) + 1.0)
        log_term = -jnp.log(jnp.maximum(sig, 1.0 - sig))
        return sig, log_term

    def kernel(tlen_ref, npts_ref,
               logits_ref, mlog_ref, mlab_ref, spts_ref, tpts_ref,
               out_ref, focal_vec, cnt_vec, card_acc):
        b = pl.program_id(0)
        qt = pl.program_id(1)

        @pl.when(jnp.logical_and(b == 0, qt == 0))
        def _():
            focal_vec[...] = jnp.zeros_like(focal_vec)
            card_acc[...] = jnp.zeros_like(card_acc)

        @pl.when(qt == 0)
        def _():
            cnt_vec[...] = jnp.zeros_like(cnt_vec)

        x = logits_ref[0].astype(jnp.float32)              # [TQ, C]; bf16 storage upcasts in-register

        # ---- 'loss_ce' dense term: every element takes the t==0 branch (one-hot never built).
        #      Element-wise accumulation only; the global reduce happens once in the finalize.
        sig, log_term = sig_and_logterm(x)
        loss0 = (jnp.maximum(x, 0.0) + log_term) * sig * sig
        focal_vec[...] += loss0

        # ---- 'cardinality': first-argmax(x) != C-1  <=>  max(x[:, :C-1]) >= x[:, C-1] ----------
        max_rest = jnp.max(x[:, :C - 1], axis=1, keepdims=True)         # [TQ, 1]
        cnt_vec[...] += (max_rest >= x[:, C - 1:]).astype(jnp.float32)  # [TQ, 1]

        @pl.when(qt == QT - 1)
        def _():  # this batch's per-query flags are complete -> accumulate |count_b - len_b|
            cnt = jnp.sum(cnt_vec[...], axis=(0, 1), keepdims=True)
            card_acc[...] += jnp.abs(cnt - tlen_ref[b])

        @pl.when(jnp.logical_and(b == B - 1, qt == QT - 1))
        def _():  # finalize everything once, write a single packed lane-dense output
            num_points = npts_ref[0]

            mlog = mlog_ref[...].astype(jnp.float32)                    # [Mpad, C]
            mlab = mlab_ref[...]                                        # [Mpad, 1] int32 (-1 pads)
            row = jax.lax.broadcasted_iota(jnp.int32, (Mpad, 1), 0)
            valid = (row < M).astype(jnp.float32)                       # [Mpad, 1]
            cls = jax.lax.broadcasted_iota(jnp.int32, (Mpad, C), 1)

            # matched (query, label) correction of the focal loss:
            #   sum_matched ( alpha * loss1 - (1-alpha) * loss0 )
            msig, mlog_term = sig_and_logterm(mlog)
            l0 = (jnp.maximum(mlog, 0.0) + mlog_term) * msig * msig
            one_m_sig = 1.0 - msig
            l1 = (jnp.maximum(-mlog, 0.0) + mlog_term) * one_m_sig * one_m_sig
            hot = (cls == mlab).astype(jnp.float32)                     # pad rows are all-zero
            corr = jnp.sum(hot * valid * (focal_alpha * l1 - one_m_alpha * l0),
                           axis=(0, 1), keepdims=True)
            dense0 = jnp.sum(focal_vec[...], axis=(0, 1), keepdims=True)
            ce = (one_m_alpha * dense0 + corr) / num_points

            # 'class_error': 100 - top-1 accuracy on matched predictions (torch first-argmax)
            is_max = mlog == jnp.max(mlog, axis=1, keepdims=True)
            pred_cls = jnp.min(jnp.where(is_max, cls, C), axis=1, keepdims=True)
            correct = jnp.where(pred_cls == mlab, valid, 0.0)
            cls_err = 100.0 - jnp.sum(correct, axis=(0, 1), keepdims=True) * inv_M

            card_err = card_acc[...] * inv_B

            # 'loss_point': L1 on matched points (zero/zero pads contribute nothing)
            pt_loss = jnp.sum(jnp.abs(spts_ref[...] - tpts_ref[...]),
                              axis=(0, 1), keepdims=True) / num_points

            lane = jax.lax.broadcasted_iota(jnp.int32, (1, 128), 1)
            out_ref[...] = (jnp.where(lane == 0, ce, 0.0)
                            + jnp.where(lane == 1, cls_err, 0.0)
                            + jnp.where(lane == 2, card_err, 0.0)
                            + jnp.where(lane == 3, pt_loss, 0.0))

    return kernel


def _run_criterion_kernel(logits, mlog, mlab, spts, tpts, tlen, npts,
                          *, B, Q, C, M, Mpad, focal_alpha):
    TQ = _pick_query_tile(Q)
    QT = Q // TQ
    kernel = _make_criterion_kernel(B=B, Q=Q, C=C, TQ=TQ, QT=QT, M=M, Mpad=Mpad,
                                    focal_alpha=focal_alpha)
    grid_spec = pltpu.PrefetchScalarGridSpec(
        num_scalar_prefetch=2,                              # tlen [B] f32, num_points [1] f32 -> SMEM
        grid=(B, QT),
        in_specs=[
            pl.BlockSpec((1, TQ, C), lambda b, q, *_: (b, q, 0)),   # logits, streamed & pipelined
            pl.BlockSpec((Mpad, C), lambda b, q, *_: (0, 0)),       # matched logits (resident)
            pl.BlockSpec((Mpad, 1), lambda b, q, *_: (0, 0)),       # matched labels
            pl.BlockSpec((Mpad, 2), lambda b, q, *_: (0, 0)),       # matched pred points
            pl.BlockSpec((Mpad, 2), lambda b, q, *_: (0, 0)),       # matched target points
        ],
        out_specs=pl.BlockSpec((1, 128), lambda b, q, *_: (0, 0)),  # one packed lane-dense output
        scratch_shapes=[pltpu.VMEM((TQ, C), jnp.float32),  # element-wise focal (t==0) accumulator
                        pltpu.VMEM((TQ, 1), jnp.float32),  # per-batch not-last-class flags
                        pltpu.VMEM((1, 1), jnp.float32)],  # sum_b |count_b - len_b|
    )
    bytes_in = int(logits.size) * logits.dtype.itemsize + 4 * (Mpad * (2 * C + 5) + B + 1)
    cost = pl.CostEstimate(flops=13 * B * Q * C + 30 * Mpad * C,
                           transcendentals=2 * (B * Q * C + Mpad * C),
                           bytes_accessed=bytes_in + 512)
    return pl.pallas_call(
        kernel,
        out_shape=jax.ShapeDtypeStruct((1, 128), jnp.float32),
        grid_spec=grid_spec,
        compiler_params=pltpu.CompilerParams(
            dimension_semantics=("arbitrary", "arbitrary"),   # accumulators carry across both axes
            vmem_limit_bytes=16 * 1024 * 1024),               # small tiles: fits v5e's default too
        cost_estimate=cost,
    )(tlen, npts, logits, mlog, mlab, spts, tpts)


def greedy_point_matcher(outputs, targets):
    # TODO(synk): Hungarian assignment (scipy.optimize.linear_sum_assignment) replaced by a
    # deterministic greedy matcher on the L1 point cost; matcher is an injected dependency.
    pred_points = np.asarray(outputs['pred_points'])
    indices = []
    for b, t in enumerate(targets):
        tp = np.asarray(t['points'])
        cost = np.abs(pred_points[b][:, None, :] - tp[None, :, :]).sum(-1)   # [Q, n]
        used, src, tgt = set(), [], []
        for j in range(tp.shape[0]):
            for s in np.argsort(cost[:, j], kind='stable'):
                if int(s) not in used:
                    used.add(int(s)); src.append(int(s)); tgt.append(j)
                    break
        indices.append((np.asarray(src, np.int64), np.asarray(tgt, np.int64)))
    return indices


class SetCriterion:
    """JAX/Pallas port of Conditional-DETR SetCriterion forward for losses labels/cardinality/points."""

    def __init__(self, num_classes, matcher, weight_dict, focal_alpha, losses):
        self.num_classes = num_classes
        self.matcher = matcher
        self.weight_dict = weight_dict
        self.focal_alpha = focal_alpha
        self.losses = losses

    @staticmethod
    def _get_src_permutation_idx(indices):
        batch_idx = np.concatenate([np.full_like(src, i) for i, (src, _) in enumerate(indices)])
        src_idx = np.concatenate([src for src, _ in indices])
        return batch_idx, src_idx

    def forward(self, outputs, targets, return_idx_costs=False):
        pred_logits = jnp.asarray(outputs['pred_logits'])                 # [B, Q, C] (f32 or bf16)
        pred_points = jnp.asarray(outputs['pred_points'], jnp.float32)    # [B, Q, 2]
        B, Q, C = pred_logits.shape
        assert C == self.num_classes and C >= 2

        indices = self.matcher({'pred_logits': pred_logits, 'pred_points': pred_points}, targets)
        batch_idx, src_idx = self._get_src_permutation_idx(indices)
        M = int(batch_idx.shape[0])
        Mpad = max(8, ((M + 7) // 8) * 8)        # pad matched rows up to a full sublane tile
        pad = Mpad - M

        labels_o = (np.concatenate([np.asarray(t['labels'])[J]
                                    for t, (_, J) in zip(targets, indices)]).astype(np.int32)
                    if M > 0 else np.zeros((0,), np.int32))
        tgt_pts = (np.concatenate([np.asarray(t['points'])[J]
                                   for t, (_, J) in zip(targets, indices)], axis=0).astype(np.float32)
                   if M > 0 else np.zeros((0, 2), np.float32))

        if M > 0:
            mlog = pred_logits[batch_idx, src_idx]                        # [M, C] (tiny gather)
            spts = pred_points[batch_idx, src_idx]                        # [M, 2]
        else:                                                             # M == 0: class_error -> 100
            mlog = jnp.zeros((0, C), pred_logits.dtype)
            spts = jnp.zeros((0, 2), jnp.float32)

        mlog_pad = jnp.pad(mlog, ((0, pad), (0, 0)))
        spts_pad = jnp.pad(spts, ((0, pad), (0, 0)))
        tpts_pad = jnp.asarray(np.pad(tgt_pts, ((0, pad), (0, 0))), jnp.float32)
        mlab_pad = jnp.asarray(np.pad(labels_o, (0, pad), constant_values=-1).reshape(Mpad, 1),
                               jnp.int32)

        tlen = jnp.asarray([float(len(t['labels'])) for t in targets], jnp.float32)
        num_points = float(max(sum(len(t['labels']) for t in targets), 1))
        npts = jnp.asarray([num_points], jnp.float32)

        packed = _run_criterion_kernel(pred_logits, mlog_pad, mlab_pad, spts_pad, tpts_pad,
                                       tlen, npts, B=B, Q=Q, C=C, M=M, Mpad=Mpad,
                                       focal_alpha=self.focal_alpha)

        losses = {}
        if 'labels' in self.losses:
            losses['loss_ce'] = packed[0, 0]
            losses['class_error'] = packed[0, 1]
        if 'cardinality' in self.losses:
            losses['cardinality_error'] = packed[0, 2]
        if 'points' in self.losses:
            losses['loss_point'] = packed[0, 3]
        # TODO(synk): aux_outputs / 'masks' / encoder_interm_supervise (TV / Sinkhorn-OT) branches not
        # exercised here (their inputs are absent in this synthetic setup).
        return losses, None


if __name__ == "__main__":
    key = jax.random.PRNGKey(0)
    B, Q, C = 2, 8, 16        # batch, num_queries, num_classes
    n_per = 3                 # ground-truth points per image

    k1, k2, k3 = jax.random.split(key, 3)
    pred_logits = jax.random.normal(k1, (B, Q, C), jnp.float32)
    pred_points = jax.nn.sigmoid(jax.random.normal(k2, (B, Q, 2), jnp.float32))

    targets = []
    for b in range(B):
        kl, kp = jax.random.split(jax.random.fold_in(k3, b))
        labels = np.asarray(jax.random.randint(kl, (n_per,), 0, C))
        points = np.asarray(jax.random.uniform(kp, (n_per, 2), jnp.float32))
        targets.append({'labels': labels, 'points': points})

    criterion = SetCriterion(
        num_classes=C,
        matcher=greedy_point_matcher,
        weight_dict={'loss_ce': 2.0, 'loss_point': 5.0},
        focal_alpha=0.25,
        losses=['labels', 'cardinality', 'points'],
    )

    losses, _ = criterion.forward(
        {'pred_logits': pred_logits, 'pred_points': pred_points}, targets)
    jax.block_until_ready(jax.tree_util.tree_leaves(losses))
    print("KERNEL_OK")
</pallas_src>

<mosaic_0001>
module attributes {stable_mosaic.version = 11 : i64} {
  func.func @kernel(%arg0: i32, %arg1: i32, %arg2: memref<2xf32, #tpu.memory_space<smem>>, %arg3: memref<1xf32, #tpu.memory_space<smem>>, %arg4: memref<1x8x16xf32, #tpu.memory_space<vmem>>, %arg5: memref<8x16xf32, #tpu.memory_space<vmem>>, %arg6: memref<8x1xi32, #tpu.memory_space<vmem>>, %arg7: memref<8x2xf32, #tpu.memory_space<vmem>>, %arg8: memref<8x2xf32, #tpu.memory_space<vmem>>, %arg9: memref<1x128xf32, #tpu.memory_space<vmem>>, %arg10: memref<8x16xf32, #tpu.memory_space<vmem>>, %arg11: memref<8x1xf32, #tpu.memory_space<vmem>>, %arg12: memref<1x1xf32, #tpu.memory_space<vmem>>) attributes {dimension_semantics = [#tpu.dimension_semantics<arbitrary>, #tpu.dimension_semantics<arbitrary>], iteration_bounds = array<i64: 2, 1>, scalar_prefetch = 2 : i64, scratch_operands = 3 : i64, tpu.core_type = #tpu.core_type<tc>, window_params = [{transform_indices = @transform_0, window_bounds = array<i64: 1, 8, 16>}, {pipeline_mode = #tpu.pipeline_mode<synchronous>, transform_indices = @transform_1, window_bounds = array<i64: 8, 16>}, {pipeline_mode = #tpu.pipeline_mode<synchronous>, transform_indices = @transform_2, window_bounds = array<i64: 8, 1>}, {pipeline_mode = #tpu.pipeline_mode<synchronous>, transform_indices = @transform_3, window_bounds = array<i64: 8, 2>}, {pipeline_mode = #tpu.pipeline_mode<synchronous>, transform_indices = @transform_4, window_bounds = array<i64: 8, 2>}, {pipeline_mode = #tpu.pipeline_mode<synchronous>, transform_indices = @transform_5, window_bounds = array<i64: 1, 128>}]} {
    %c0_i32 = arith.constant 0 : i32
    %0 = arith.cmpi eq, %arg0, %c0_i32 : i32
    %c0_i32_0 = arith.constant 0 : i32
    %1 = arith.cmpi eq, %arg1, %c0_i32_0 : i32
    %2 = arith.andi %0, %1 : i1
    %3 = arith.extui %2 : i1 to i32
    %c0_i32_1 = arith.constant 0 : i32
    %4 = arith.cmpi ne, %3, %c0_i32_1 : i32
    scf.if %4 {
      %cst_24 = arith.constant 0.000000e+00 : f32
      %49 = vector.broadcast %cst_24 : f32 to vector<8x16xf32>
      %c0_25 = arith.constant 0 : index
      %c0_26 = arith.constant 0 : index
      %50 = vector.load %arg10[%c0_25, %c0_26] : memref<8x16xf32, #tpu.memory_space<vmem>>, vector<8x16xf32>
      tpu.vector_store %arg10[%c0_25, %c0_26], %49 {strides = array<i32>} : memref<8x16xf32, #tpu.memory_space<vmem>>, vector<8x16xf32>,
      %cst_27 = arith.constant 0.000000e+00 : f32
      %51 = vector.broadcast %cst_27 : f32 to vector<1x1xf32>
      %c0_28 = arith.constant 0 : index
      %c0_29 = arith.constant 0 : index
      %52 = vector.load %arg12[%c0_28, %c0_29] : memref<1x1xf32, #tpu.memory_space<vmem>>, vector<1x1xf32>
      tpu.vector_store %arg12[%c0_28, %c0_29], %51 {strides = array<i32>} : memref<1x1xf32, #tpu.memory_space<vmem>>, vector<1x1xf32>,
    } else {
    }
    %c0_i32_2 = arith.constant 0 : i32
    %5 = arith.cmpi eq, %arg1, %c0_i32_2 : i32
    %6 = arith.extui %5 : i1 to i32
    %c0_i32_3 = arith.constant 0 : i32
    %7 = arith.cmpi ne, %6, %c0_i32_3 : i32
    scf.if %7 {
      %cst_24 = arith.constant 0.000000e+00 : f32
      %49 = vector.broadcast %cst_24 : f32 to vector<8x1xf32>
      %c0_25 = arith.constant 0 : index
      %c0_26 = arith.constant 0 : index
      %50 = vector.load %arg11[%c0_25, %c0_26] : memref<8x1xf32, #tpu.memory_space<vmem>>, vector<8x1xf32>
      tpu.vector_store %arg11[%c0_25, %c0_26], %49 {strides = array<i32>} : memref<8x1xf32, #tpu.memory_space<vmem>>, vector<8x1xf32>,
    } else {
    }
    %c0 = arith.constant 0 : index
    %c0_4 = arith.constant 0 : index
    %c0_5 = arith.constant 0 : index
    %8 = vector.load %arg4[%c0, %c0_4, %c0_5] : memref<1x8x16xf32, #tpu.memory_space<vmem>>, vector<1x8x16xf32>
    %9 = vector.shape_cast %8 : vector<1x8x16xf32> to vector<8x16xf32>
    %cst = arith.constant 5.000000e-01 : f32
    %10 = vector.broadcast %cst : f32 to vector<8x16xf32>
    %11 = arith.mulf %10, %9 : vector<8x16xf32>
    %12 = math.tanh %11 : vector<8x16xf32>
    %cst_6 = arith.constant 1.000000e+00 : f32
    %13 = vector.broadcast %cst_6 : f32 to vector<8x16xf32>
    %14 = arith.addf %12, %13 : vector<8x16xf32>
    %cst_7 = arith.constant 5.000000e-01 : f32
    %15 = vector.broadcast %cst_7 : f32 to vector<8x16xf32>
    %16 = arith.mulf %15, %14 : vector<8x16xf32>
    %cst_8 = arith.constant 1.000000e+00 : f32
    %17 = vector.broadcast %cst_8 : f32 to vector<8x16xf32>
    %18 = arith.subf %17, %16 : vector<8x16xf32>
    %19 = arith.maximumf %16, %18 : vector<8x16xf32>
    %20 = math.log %19 : vector<8x16xf32>
    %cst_9 = arith.constant 0.000000e+00 : f32
    %21 = vector.broadcast %cst_9 : f32 to vector<8x16xf32>
    %22 = arith.subf %21, %20 : vector<8x16xf32>
    %cst_10 = arith.constant 0.000000e+00 : f32
    %23 = vector.broadcast %cst_10 : f32 to vector<8x16xf32>
    %24 = arith.maximumf %9, %23 : vector<8x16xf32>
    %25 = arith.addf %24, %22 : vector<8x16xf32>
    %26 = arith.mulf %25, %16 : vector<8x16xf32>
    %27 = arith.mulf %26, %16 : vector<8x16xf32>
    %c0_11 = arith.constant 0 : index
    %c0_12 = arith.constant 0 : index
    %28 = vector.load %arg10[%c0_11, %c0_12] : memref<8x16xf32, #tpu.memory_space<vmem>>, vector<8x16xf32>
    %29 = arith.addf %28, %27 : vector<8x16xf32>
    %c0_13 = arith.constant 0 : index
    %c0_14 = arith.constant 0 : index
    %30 = vector.load %arg10[%c0_13, %c0_14] : memref<8x16xf32, #tpu.memory_space<vmem>>, vector<8x16xf32>
    tpu.vector_store %arg10[%c0_13, %c0_14], %29 {strides = array<i32>} : memref<8x16xf32, #tpu.memory_space<vmem>>, vector<8x16xf32>,
    %31 = vector.extract_strided_slice %9 {offsets = [0, 0], sizes = [8, 15], strides = [1, 1]} : vector<8x16xf32> to vector<8x15xf32>
    %cst_15 = arith.constant dense<0xFF800000> : vector<8xf32>
    %32 = vector.multi_reduction <maximumf>, %31, %cst_15 [1] : vector<8x15xf32> to vector<8xf32>
    %33 = vector.shape_cast %32 : vector<8xf32> to vector<8x1xf32>
    %c0_16 = arith.constant 0 : index
    %c0_17 = arith.constant 0 : index
    %34 = vector.load %arg11[%c0_16, %c0_17] : memref<8x1xf32, #tpu.memory_space<vmem>>, vector<8x1xf32>
    %35 = vector.extract_strided_slice %9 {offsets = [0, 15], sizes = [8, 1], strides = [1, 1]} : vector<8x16xf32> to vector<8x1xf32>
    %36 = arith.cmpf oge, %33, %35 : vector<8x1xf32>
    %37 = arith.extui %36 : vector<8x1xi1> to vector<8x1xi32>
    %38 = arith.sitofp %37 : vector<8x1xi32> to vector<8x1xf32>
    %39 = arith.addf %34, %38 : vector<8x1xf32>
    %c0_18 = arith.constant 0 : index
    %c0_19 = arith.constant 0 : index
    %40 = vector.load %arg11[%c0_18, %c0_19] : memref<8x1xf32, #tpu.memory_space<vmem>>, vector<8x1xf32>
    tpu.vector_store %arg11[%c0_18, %c0_19], %39 {strides = array<i32>} : memref<8x1xf32, #tpu.memory_space<vmem>>, vector<8x1xf32>,
    %c0_i32_20 = arith.constant 0 : i32
    %41 = arith.cmpi eq, %arg1, %c0_i32_20 : i32
    %42 = arith.extui %41 : i1 to i32
    %c0_i32_21 = arith.constant 0 : i32
    %43 = arith.cmpi ne, %42, %c0_i32_21 : i32
    scf.if %43 {
      %c0_24 = arith.constant 0 : index
      %c0_25 = arith.constant 0 : index
      %49 = vector.load %arg11[%c0_24, %c0_25] : memref<8x1xf32, #tpu.memory_space<vmem>>, vector<8x1xf32>
      %50 = vector.shape_cast %49 : vector<8x1xf32> to vector<1x8x1xf32>
      %cst_26 = arith.constant dense<0.000000e+00> : vector<1xf32>
      %51 = vector.multi_reduction <add>, %50, %cst_26 [1, 2] : vector<1x8x1xf32> to vector<1xf32>
      %52 = vector.shape_cast %51 : vector<1xf32> to vector<1x1x1xf32>
      %53 = vector.extract %52[0, 0, 0] : f32 from vector<1x1x1xf32>
      %54 = vector.broadcast %53 : f32 to vector<1x1xf32>
      %c0_27 = arith.constant 0 : index
      %c0_28 = arith.constant 0 : index
      %55 = vector.load %arg12[%c0_27, %c0_28] : memref<1x1xf32, #tpu.memory_space<vmem>>, vector<1x1xf32>
      %56 = arith.index_cast %arg0 : i32 to index
      %57 = memref.load %arg2[%56] : memref<2xf32, #tpu.memory_space<smem>>
      %58 = vector.broadcast %57 : f32 to vector<1x1xf32>
      %59 = arith.subf %54, %58 : vector<1x1xf32>
      %60 = math.absf %59 : vector<1x1xf32>
      %61 = arith.addf %55, %60 : vector<1x1xf32>
      %c0_29 = arith.constant 0 : index
      %c0_30 = arith.constant 0 : index
      %62 = vector.load %arg12[%c0_29, %c0_30] : memref<1x1xf32, #tpu.memory_space<vmem>>, vector<1x1xf32>
      tpu.vector_store %arg12[%c0_29, %c0_30], %61 {strides = array<i32>} : memref<1x1xf32, #tpu.memory_space<vmem>>, vector<1x1xf32>,
    } else {
    }
    %c1_i32 = arith.constant 1 : i32
    %44 = arith.cmpi eq, %arg0, %c1_i32 : i32
    %c0_i32_22 = arith.constant 0 : i32
    %45 = arith.cmpi eq, %arg1, %c0_i32_22 : i32
    %46 = arith.andi %44, %45 : i1
    %47 = arith.extui %46 : i1 to i32
    %c0_i32_23 = arith.constant 0 : i32
    %48 = arith.cmpi ne, %47, %c0_i32_23 : i32
    scf.if %48 {
      %c0_24 = arith.constant 0 : index
      %49 = memref.load %arg3[%c0_24] : memref<1xf32, #tpu.memory_space<smem>>
      %c0_25 = arith.constant 0 : index
      %c0_26 = arith.constant 0 : index
      %50 = vector.load %arg5[%c0_25, %c0_26] : memref<8x16xf32, #tpu.memory_space<vmem>>, vector<8x16xf32>
      %c0_27 = arith.constant 0 : index
      %c0_28 = arith.constant 0 : index
      %51 = vector.load %arg6[%c0_27, %c0_28] : memref<8x1xi32, #tpu.memory_space<vmem>>, vector<8x1xi32>
      %52 = tpu.iota {dimensions = array<i32: 0>} : vector<8x1xi32>
      %c6_i32 = arith.constant 6 : i32
      %53 = vector.broadcast %c6_i32 : i32 to vector<8x1xi32>
      %54 = arith.cmpi slt, %52, %53 : vector<8x1xi32>
      %55 = arith.extui %54 : vector<8x1xi1> to vector<8x1xi32>
      %56 = arith.sitofp %55 : vector<8x1xi32> to vector<8x1xf32>
      %57 = tpu.iota {dimensions = array<i32: 1>} : vector<8x16xi32>
      %cst_29 = arith.constant 5.000000e-01 : f32
      %58 = vector.broadcast %cst_29 : f32 to vector<8x16xf32>
      %59 = arith.mulf %58, %50 : vector<8x16xf32>
      %60 = math.tanh %59 : vector<8x16xf32>
      %cst_30 = arith.constant 1.000000e+00 : f32
      %61 = vector.broadcast %cst_30 : f32 to vector<8x16xf32>
      %62 = arith.addf %60, %61 : vector<8x16xf32>
      %cst_31 = arith.constant 5.000000e-01 : f32
      %63 = vector.broadcast %cst_31 : f32 to vector<8x16xf32>
      %64 = arith.mulf %63, %62 : vector<8x16xf32>
      %cst_32 = arith.constant 1.000000e+00 : f32
      %65 = vector.broadcast %cst_32 : f32 to vector<8x16xf32>
      %66 = arith.subf %65, %64 : vector<8x16xf32>
      %67 = arith.maximumf %64, %66 : vector<8x16xf32>
      %68 = math.log %67 : vector<8x16xf32>
      %cst_33 = arith.constant 0.000000e+00 : f32
      %69 = vector.broadcast %cst_33 : f32 to vector<8x16xf32>
      %70 = arith.subf %69, %68 : vector<8x16xf32>
      %cst_34 = arith.constant 0.000000e+00 : f32
      %71 = vector.broadcast %cst_34 : f32 to vector<8x16xf32>
      %72 = arith.maximumf %50, %71 : vector<8x16xf32>
      %73 = arith.addf %72, %70 : vector<8x16xf32>
      %74 = arith.mulf %73, %64 : vector<8x16xf32>
      %75 = arith.mulf %74, %64 : vector<8x16xf32>
      %cst_35 = arith.constant 1.000000e+00 : f32
      %76 = vector.broadcast %cst_35 : f32 to vector<8x16xf32>
      %77 = arith.subf %76, %64 : vector<8x16xf32>
      %cst_36 = arith.constant 0.000000e+00 : f32
      %78 = vector.broadcast %cst_36 : f32 to vector<8x16xf32>
      %79 = arith.subf %78, %50 : vector<8x16xf32>
      %cst_37 = arith.constant 0.000000e+00 : f32
      %80 = vector.broadcast %cst_37 : f32 to vector<8x16xf32>
      %81 = arith.maximumf %79, %80 : vector<8x16xf32>
      %82 = arith.addf %81, %70 : vector<8x16xf32>
      %83 = arith.mulf %82, %77 : vector<8x16xf32>
      %84 = arith.mulf %83, %77 : vector<8x16xf32>
      %85 = vector.broadcast %51 : vector<8x1xi32> to vector<8x16xi32>
      %86 = arith.cmpi eq, %57, %85 : vector<8x16xi32>
      %87 = arith.extui %86 : vector<8x16xi1> to vector<8x16xi32>
      %88 = arith.sitofp %87 : vector<8x16xi32> to vector<8x16xf32>
      %89 = vector.broadcast %56 : vector<8x1xf32> to vector<8x16xf32>
      %90 = arith.mulf %88, %89 : vector<8x16xf32>
      %cst_38 = arith.constant 2.500000e-01 : f32
      %91 = vector.broadcast %cst_38 : f32 to vector<8x16xf32>
      %92 = arith.mulf %91, %84 : vector<8x16xf32>
      %cst_39 = arith.constant 7.500000e-01 : f32
      %93 = vector.broadcast %cst_39 : f32 to vector<8x16xf32>
      %94 = arith.mulf %93, %75 : vector<8x16xf32>
      %95 = arith.subf %92, %94 : vector<8x16xf32>
      %96 = arith.mulf %90, %95 : vector<8x16xf32>
      %97 = vector.shape_cast %96 : vector<8x16xf32> to vector<1x8x16xf32>
      %cst_40 = arith.constant dense<0.000000e+00> : vector<1xf32>
      %98 = vector.multi_reduction <add>, %97, %cst_40 [1, 2] : vector<1x8x16xf32> to vector<1xf32>
      %99 = vector.shape_cast %98 : vector<1xf32> to vector<1x1x1xf32>
      %100 = vector.extract %99[0, 0, 0] : f32 from vector<1x1x1xf32>
      %101 = vector.broadcast %100 : f32 to vector<1x1xf32>
      %c0_41 = arith.constant 0 : index
      %c0_42 = arith.constant 0 : index
      %102 = vector.load %arg10[%c0_41, %c0_42] : memref<8x16xf32, #tpu.memory_space<vmem>>, vector<8x16xf32>
      %103 = vector.shape_cast %102 : vector<8x16xf32> to vector<1x8x16xf32>
      %cst_43 = arith.constant dense<0.000000e+00> : vector<1xf32>
      %104 = vector.multi_reduction <add>, %103, %cst_43 [1, 2] : vector<1x8x16xf32> to vector<1xf32>
      %105 = vector.shape_cast %104 : vector<1xf32> to vector<1x1x1xf32>
      %106 = vector.extract %105[0, 0, 0] : f32 from vector<1x1x1xf32>
      %107 = vector.broadcast %106 : f32 to vector<1x1xf32>
      %cst_44 = arith.constant 7.500000e-01 : f32
      %108 = vector.broadcast %cst_44 : f32 to vector<1x1xf32>
      %109 = arith.mulf %108, %107 : vector<1x1xf32>
      %110 = arith.addf %109, %101 : vector<1x1xf32>
      %111 = vector.broadcast %49 : f32 to vector<1x1xf32>
      %112 = arith.divf %110, %111 : vector<1x1xf32>
      %cst_45 = arith.constant dense<0xFF800000> : vector<8xf32>
      %113 = vector.multi_reduction <maximumf>, %50, %cst_45 [1] : vector<8x16xf32> to vector<8xf32>
      %114 = vector.shape_cast %113 : vector<8xf32> to vector<8x1xf32>
      %115 = vector.broadcast %114 : vector<8x1xf32> to vector<8x16xf32>
      %116 = arith.cmpf oeq, %50, %115 : vector<8x16xf32>
      %c16_i32 = arith.constant 16 : i32
      %117 = vector.broadcast %c16_i32 : i32 to vector<8x16xi32>
      %118 = arith.select %116, %57, %117 : vector<8x16xi1>, vector<8x16xi32>
      %cst_46 = arith.constant dense<2147483647> : vector<8xi32>
      %119 = vector.multi_reduction <minsi>, %118, %cst_46 [1] : vector<8x16xi32> to vector<8xi32>
      %120 = vector.shape_cast %119 : vector<8xi32> to vector<8x1xi32>
      %121 = arith.cmpi eq, %120, %51 : vector<8x1xi32>
      %cst_47 = arith.constant 0.000000e+00 : f32
      %122 = vector.broadcast %cst_47 : f32 to vector<8x1xf32>
      %123 = arith.select %121, %56, %122 : vector<8x1xi1>, vector<8x1xf32>
      %124 = vector.shape_cast %123 : vector<8x1xf32> to vector<1x8x1xf32>
      %cst_48 = arith.constant dense<0.000000e+00> : vector<1xf32>
      %125 = vector.multi_reduction <add>, %124, %cst_48 [1, 2] : vector<1x8x1xf32> to vector<1xf32>
      %126 = vector.shape_cast %125 : vector<1xf32> to vector<1x1x1xf32>
      %127 = vector.extract %126[0, 0, 0] : f32 from vector<1x1x1xf32>
      %128 = vector.broadcast %127 : f32 to vector<1x1xf32>
      %cst_49 = arith.constant 16.666666 : f32
      %129 = vector.broadcast %cst_49 : f32 to vector<1x1xf32>
      %130 = arith.mulf %128, %129 : vector<1x1xf32>
      %cst_50 = arith.constant 1.000000e+02 : f32
      %131 = vector.broadcast %cst_50 : f32 to vector<1x1xf32>
      %132 = arith.subf %131, %130 : vector<1x1xf32>
      %c0_51 = arith.constant 0 : index
      %c0_52 = arith.constant 0 : index
      %133 = vector.load %arg12[%c0_51, %c0_52] : memref<1x1xf32, #tpu.memory_space<vmem>>, vector<1x1xf32>
      %cst_53 = arith.constant 5.000000e-01 : f32
      %134 = vector.broadcast %cst_53 : f32 to vector<1x1xf32>
      %135 = arith.mulf %133, %134 : vector<1x1xf32>
      %c0_54 = arith.constant 0 : index
      %c0_55 = arith.constant 0 : index
      %136 = vector.load %arg7[%c0_54, %c0_55] : memref<8x2xf32, #tpu.memory_space<vmem>>, vector<8x2xf32>
      %c0_56 = arith.constant 0 : index
      %c0_57 = arith.constant 0 : index
      %137 = vector.load %arg8[%c0_56, %c0_57] : memref<8x2xf32, #tpu.memory_space<vmem>>, vector<8x2xf32>
      %138 = arith.subf %136, %137 : vector<8x2xf32>
      %139 = math.absf %138 : vector<8x2xf32>
      %140 = vector.shape_cast %139 : vector<8x2xf32> to vector<1x8x2xf32>
      %cst_58 = arith.constant dense<0.000000e+00> : vector<1xf32>
      %141 = vector.multi_reduction <add>, %140, %cst_58 [1, 2] : vector<1x8x2xf32> to vector<1xf32>
      %142 = vector.shape_cast %141 : vector<1xf32> to vector<1x1x1xf32>
      %143 = vector.extract %142[0, 0, 0] : f32 from vector<1x1x1xf32>
      %144 = vector.broadcast %143 : f32 to vector<1x1xf32>
      %145 = vector.broadcast %49 : f32 to vector<1x1xf32>
      %146 = arith.divf %144, %145 : vector<1x1xf32>
      %147 = tpu.iota {dimensions = array<i32: 1>} : vector<1x128xi32>
      %c0_i32_59 = arith.constant 0 : i32
      %148 = vector.broadcast %c0_i32_59 : i32 to vector<1x128xi32>
      %149 = arith.cmpi eq, %147, %148 : vector<1x128xi32>
      %cst_60 = arith.constant 0.000000e+00 : f32
      %150 = vector.shape_cast %112 : vector<1x1xf32> to vector<1x1xf32>
      %151 = vector.broadcast %150 : vector<1x1xf32> to vector<1x128xf32>
      %152 = vector.broadcast %cst_60 : f32 to vector<1x128xf32>
      %153 = arith.select %149, %151, %152 : vector<1x128xi1>, vector<1x128xf32>
      %c1_i32_61 = arith.constant 1 : i32
      %154 = vector.broadcast %c1_i32_61 : i32 to vector<1x128xi32>
      %155 = arith.cmpi eq, %147, %154 : vector<1x128xi32>
      %cst_62 = arith.constant 0.000000e+00 : f32
      %156 = vector.shape_cast %132 : vector<1x1xf32> to vector<1x1xf32>
      %157 = vector.broadcast %156 : vector<1x1xf32> to vector<1x128xf32>
      %158 = vector.broadcast %cst_62 : f32 to vector<1x128xf32>
      %159 = arith.select %155, %157, %158 : vector<1x128xi1>, vector<1x128xf32>
      %160 = arith.addf %153, %159 : vector<1x128xf32>
      %c2_i32 = arith.constant 2 : i32
      %161 = vector.broadcast %c2_i32 : i32 to vector<1x128xi32>
      %162 = arith.cmpi eq, %147, %161 : vector<1x128xi32>
      %cst_63 = arith.constant 0.000000e+00 : f32
      %163 = vector.shape_cast %135 : vector<1x1xf32> to vector<1x1xf32>
      %164 = vector.broadcast %163 : vector<1x1xf32> to vector<1x128xf32>
      %165 = vector.broadcast %cst_63 : f32 to vector<1x128xf32>
      %166 = arith.select %162, %164, %165 : vector<1x128xi1>, vector<1x128xf32>
      %167 = arith.addf %160, %166 : vector<1x128xf32>
      %c3_i32 = arith.constant 3 : i32
      %168 = vector.broadcast %c3_i32 : i32 to vector<1x128xi32>
      %169 = arith.cmpi eq, %147, %168 : vector<1x128xi32>
      %cst_64 = arith.constant 0.000000e+00 : f32
      %170 = vector.shape_cast %146 : vector<1x1xf32> to vector<1x1xf32>
      %171 = vector.broadcast %170 : vector<1x1xf32> to vector<1x128xf32>
      %172 = vector.broadcast %cst_64 : f32 to vector<1x128xf32>
      %173 = arith.select %169, %171, %172 : vector<1x128xi1>, vector<1x128xf32>
      %174 = arith.addf %167, %173 : vector<1x128xf32>
      %c0_65 = arith.constant 0 : index
      %c0_66 = arith.constant 0 : index
      %175 = vector.load %arg9[%c0_65, %c0_66] : memref<1x128xf32, #tpu.memory_space<vmem>>, vector<1x128xf32>
      tpu.vector_store %arg9[%c0_65, %c0_66], %174 {strides = array<i32>} : memref<1x128xf32, #tpu.memory_space<vmem>>, vector<1x128xf32>,
    } else {
    }
    return
  }
  func.func @transform_0(%arg0: i32, %arg1: i32, %arg2: memref<2xf32, #tpu.memory_space<smem>>, %arg3: memref<1xf32, #tpu.memory_space<smem>>) -> (i32, i32, i32) {
    %c0_i32 = arith.constant 0 : i32
    %c0_i32_0 = arith.constant 0 : i32
    return %arg0, %arg1, %c0_i32 : i32, i32, i32
  }
  func.func @transform_1(%arg0: i32, %arg1: i32, %arg2: memref<2xf32, #tpu.memory_space<smem>>, %arg3: memref<1xf32, #tpu.memory_space<smem>>) -> (i32, i32) {
    %c0_i32 = arith.constant 0 : i32
    %c0_i32_0 = arith.constant 0 : i32
    %c0_i32_1 = arith.constant 0 : i32
    return %c0_i32, %c0_i32_0 : i32, i32
  }
  func.func @transform_2(%arg0: i32, %arg1: i32, %arg2: memref<2xf32, #tpu.memory_space<smem>>, %arg3: memref<1xf32, #tpu.memory_space<smem>>) -> (i32, i32) {
    %c0_i32 = arith.constant 0 : i32
    %c0_i32_0 = arith.constant 0 : i32
    %c0_i32_1 = arith.constant 0 : i32
    return %c0_i32, %c0_i32_0 : i32, i32
  }
  func.func @transform_3(%arg0: i32, %arg1: i32, %arg2: memref<2xf32, #tpu.memory_space<smem>>, %arg3: memref<1xf32, #tpu.memory_space<smem>>) -> (i32, i32) {
    %c0_i32 = arith.constant 0 : i32
    %c0_i32_0 = arith.constant 0 : i32
    %c0_i32_1 = arith.constant 0 : i32
    return %c0_i32, %c0_i32_0 : i32, i32
  }
  func.func @transform_4(%arg0: i32, %arg1: i32, %arg2: memref<2xf32, #tpu.memory_space<smem>>, %arg3: memref<1xf32, #tpu.memory_space<smem>>) -> (i32, i32) {
    %c0_i32 = arith.constant 0 : i32
    %c0_i32_0 = arith.constant 0 : i32
    %c0_i32_1 = arith.constant 0 : i32
    return %c0_i32, %c0_i32_0 : i32, i32
  }
  func.func @transform_5(%arg0: i32, %arg1: i32, %arg2: memref<2xf32, #tpu.memory_space<smem>>, %arg3: memref<1xf32, #tpu.memory_space<smem>>) -> (i32, i32) {
    %c0_i32 = arith.constant 0 : i32
    %c0_i32_0 = arith.constant 0 : i32
    %c0_i32_1 = arith.constant 0 : i32
    return %c0_i32, %c0_i32_0 : i32, i32
  }
}

</mosaic_0001>

<llo_original>
// kernel: tpu_custom_call.1
$region0: #{tpu_custom_call.1}
  #allocation0 [shape = 'u32[]', space=smem, size = 0x4, offset = 0x4, fixed_abs, tag = 'smem constant byte address 0x4 - core index']
  #allocation1 [shape = 'u32[72,128]{1,0:T(1,128)}', space=vmem, size = 0x9000, scoped, tag = 'internal scratch']
  #allocation2 [shape = 'f32[8,16]{1,0:T(8,128)}', space=vmem, size = 0x1000, scoped, tag = 'scratch operand']
  #allocation3 [shape = 'f32[8,1]{1,0:T(8,128)}', space=vmem, size = 0x1000, scoped, tag = 'scratch operand']
  #allocation4 [shape = 'f32[1,1]{1,0:T(1,128)}', space=vmem, size = 0x200, scoped, tag = 'scratch operand']
  #allocation5 [shape = 's32[1]{0}', space=sflag, size = 0x4, scoped, tag = 'scoped memory for tpu_custom_call.1']
  #allocation6 [shape = 'u8[512]{0}', space=smem, size = 0x200, scoped, tag = 'prefetched SMEM operand 0']
  #allocation7 [shape = 'f32[1]{0:T(128)S(6)}', space=smem, size = 0x200, scoped, tag = 'prefetched SMEM operand 1']
  %s0 = inlined_call_operand.vmem [shape: f32[2], index: 0, kind: input, shape index: {}]
  %s1 = inlined_call_operand.<no memory space> [shape: f32[1], index: 1, kind: input, shape index: {}]
  %s2 = inlined_call_operand.vmem [shape: f32[2,8,16], index: 2, kind: input, shape index: {}]
  %s3 = inlined_call_operand.vmem [shape: f32[8,16], index: 3, kind: input, shape index: {}]
  %s4 = inlined_call_operand.vmem [shape: s32[8,1], index: 4, kind: input, shape index: {}]
  %s5 = inlined_call_operand.vmem [shape: f32[8,2], index: 5, kind: input, shape index: {}]
  %s6 = inlined_call_operand.vmem [shape: f32[8,2], index: 6, kind: input, shape index: {}]
  %s7 = inlined_call_operand.hbm [shape: f32[1,128], index: 7, kind: output, shape index: {}]
  %s8 = sld [smem:[#allocation0]]
  $region69: #{tpu_custom_call.1} parent=0
    _
  %s10 = ssub.s32 1, %s8
  %s11 = scalar_select 0, %s10, %s8
  %s13 = sshll.u32 %s0, 4
  %s14 = int_to_ptr.vmem [resolvable:$true] %s13
  %16 = dma.vmem_to_smem %s14, 16, [#allocation6], [#allocation5]
  %17 = sst [smem:[#allocation7]] %s1
  %19 = dma.done [#allocation5], 16
  %20 = sfence
  $region1: #{tpu_custom_call.1} parent=0
    #allocation8 [shape = 'u8[512]{0}', space=vmem, size = 0x400, scoped, tag = 'output window, operand 0, single buffered']
    #allocation9 [shape = 's32[2]{0}', space=sflag, size = 0x8, scoped, tag = 'scoped memory for tpu_custom_call.1']
    %21 = vsyncpa [#allocation9], 0
    loop: start=0, step=1, limit=4
    $region2: #{tpu_custom_call.1} parent=1 // loop_pre_header
      _
    $region3: #{tpu_custom_call.1} parent=1 // loop_header
      %s23 = sphi 0, %s27
      %p24 = scmp.ge.s32.totalorder %s23, 4
      %s30 = sphi 0, %s42
      %s31 = sphi 0, %s38
      %s32 = sphi 0, %s30
      %s33 = sphi 0, %s31
      %s34 = sphi 0, %s32
      %s35 = sphi 0, %s33
      %s47 = sphi 0, %s49
      %s50 = sphi 0, %s47
      %s51 = sphi 0, %s50
      %s67 = sphi 0, %s51
      %s71 = sphi 0, %s71
      %s73 = sphi 0, %s71
      %s74 = sphi 0, %s73
      %s88 = sphi 0, %s74
      %s92 = sphi 0, %s92
      %s94 = sphi 0, %s92
      %s95 = sphi 0, %s94
      %s109 = sphi 0, %s95
      %s113 = sphi 0, %s113
      %s115 = sphi 0, %s113
      %s116 = sphi 0, %s115
      %s130 = sphi 0, %s116
      %s134 = sphi 0, %s134
      %s136 = sphi 0, %s134
      %s137 = sphi 0, %s136
      %s151 = sphi 0, %s137
      %s155 = sphi 0, %s155
      %s157 = sphi 0, %s155
      %s158 = sphi 0, %s157
      %s172 = sphi 0, %s158
    $region4: #{tpu_custom_call.1} parent=1 // loop_header_branch
      %26 = sbr.rel (%p24) target = $region8
    $region5: #{tpu_custom_call.1} parent=1 // loop_body
      %s28 = ssub.s32 %s23, 1
      %s29 = ssub.s32 %s23, 2
      %s36 = sadd.s32 1, %s31
      %p37 = scmp.ge.s32.totalorder %s36, 1
      %s38 = scalar_select %p37, 0, %s36
      %s39 = sadd.s32 1, %s30
      %s40 = scalar_select %p37, %s39, %s30
      %p41 = scmp.ge.s32.totalorder %s40, 2
      %s42 = scalar_select %p41, 0, %s40
      %s43 = ssub.s32 %s30, %s42
      %s44 = ssub.s32 %s31, %s38
      %s45 = sor.u32 %s43, %s44
      %p46 = scmp.eq.s32.totalorder %s45, 0
      %s48 = sadd.s32 %s47, 1
      %s49 = scalar_select %p46, %s47, %s48
      %p52 = pneg %p46
      %p53 = scmp.eq.s32.totalorder %s23, 1
      %p54 = por %p52, %p53
      %p55 = scmp.ne.s32.totalorder %s47, %s50
      %p56 = scmp.eq.s32.totalorder %s23, 0
      %p57 = por %p55, %p56
      %p58 = scmp.ne.s32.totalorder %s47, %s50
      %p59 = scmp.eq.s32.totalorder %s28, 1
      %p60 = por %p58, %p59
      %p61 = scmp.ne.s32.totalorder %s50, %s51
      %p62 = scmp.eq.s32.totalorder %s28, 0
      %p63 = por %p61, %p62
      %p64 = scmp.ne.s32.totalorder %s50, %s51
      %p65 = scmp.eq.s32.totalorder %s29, 1
      %p66 = por %p64, %p65
      %p68 = scmp.ne.s32.totalorder %s51, %s67
      %p69 = scmp.eq.s32.totalorder %s29, 0
      %p70 = por %p68, %p69
      %s72 = sadd.s32 %s71, 1
      %p75 = scmp.eq.s32.totalorder %s23, 1
      %p76 = scmp.ne.s32.totalorder %s71, %s73
      %p77 = scmp.eq.s32.totalorder %s23, 0
      %p78 = por %p76, %p77
      %p79 = scmp.ne.s32.totalorder %s71, %s73
      %p80 = scmp.eq.s32.totalorder %s28, 1
      %p81 = por %p79, %p80
      %p82 = scmp.ne.s32.totalorder %s73, %s74
      %p83 = scmp.eq.s32.totalorder %s28, 0
      %p84 = por %p82, %p83
      %p85 = scmp.ne.s32.totalorder %s73, %s74
      %p86 = scmp.eq.s32.totalorder %s29, 1
      %p87 = por %p85, %p86
      %p89 = scmp.ne.s32.totalorder %s74, %s88
      %p90 = scmp.eq.s32.totalorder %s29, 0
      %p91 = por %p89, %p90
      %s93 = sadd.s32 %s92, 1
      %p96 = scmp.eq.s32.totalorder %s23, 1
      %p97 = scmp.ne.s32.totalorder %s92, %s94
      %p98 = scmp.eq.s32.totalorder %s23, 0
      %p99 = por %p97, %p98
      %p100 = scmp.ne.s32.totalorder %s92, %s94
      %p101 = scmp.eq.s32.totalorder %s28, 1
      %p102 = por %p100, %p101
      %p103 = scmp.ne.s32.totalorder %s94, %s95
      %p104 = scmp.eq.s32.totalorder %s28, 0
      %p105 = por %p103, %p104
      %p106 = scmp.ne.s32.totalorder %s94, %s95
      %p107 = scmp.eq.s32.totalorder %s29, 1
      %p108 = por %p106, %p107
      %p110 = scmp.ne.s32.totalorder %s95, %s109
      %p111 = scmp.eq.s32.totalorder %s29, 0
      %p112 = por %p110, %p111
      %s114 = sadd.s32 %s113, 1
      %p117 = scmp.eq.s32.totalorder %s23, 1
      %p118 = scmp.ne.s32.totalorder %s113, %s115
      %p119 = scmp.eq.s32.totalorder %s23, 0
      %p120 = por %p118, %p119
      %p121 = scmp.ne.s32.totalorder %s113, %s115
      %p122 = scmp.eq.s32.totalorder %s28, 1
      %p123 = por %p121, %p122
      %p124 = scmp.ne.s32.totalorder %s115, %s116
      %p125 = scmp.eq.s32.totalorder %s28, 0
      %p126 = por %p124, %p125
      %p127 = scmp.ne.s32.totalorder %s115, %s116
      %p128 = scmp.eq.s32.totalorder %s29, 1
      %p129 = por %p127, %p128
      %p131 = scmp.ne.s32.totalorder %s116, %s130
      %p132 = scmp.eq.s32.totalorder %s29, 0
      %p133 = por %p131, %p132
      %s135 = sadd.s32 %s134, 1
      %p138 = scmp.eq.s32.totalorder %s23, 1
      %p139 = scmp.ne.s32.totalorder %s134, %s136
      %p140 = scmp.eq.s32.totalorder %s23, 0
      %p141 = por %p139, %p140
      %p142 = scmp.ne.s32.totalorder %s134, %s136
      %p143 = scmp.eq.s32.totalorder %s28, 1
      %p144 = por %p142, %p143
      %p145 = scmp.ne.s32.totalorder %s136, %s137
      %p146 = scmp.eq.s32.totalorder %s28, 0
      %p147 = por %p145, %p146
      %p148 = scmp.ne.s32.totalorder %s136, %s137
      %p149 = scmp.eq.s32.totalorder %s29, 1
      %p150 = por %p148, %p149
      %p152 = scmp.ne.s32.totalorder %s137, %s151
      %p153 = scmp.eq.s32.totalorder %s29, 0
      %p154 = por %p152, %p153
      %s156 = sadd.s32 %s155, 1
      %p159 = scmp.eq.s32.totalorder %s23, 1
      %p160 = scmp.ne.s32.totalorder %s155, %s157
      %p161 = scmp.eq.s32.totalorder %s23, 0
      %p162 = por %p160, %p161
      %p163 = scmp.ne.s32.totalorder %s155, %s157
      %p164 = scmp.eq.s32.totalorder %s28, 1
      %p165 = por %p163, %p164
      %p166 = scmp.ne.s32.totalorder %s157, %s158
      %p167 = scmp.eq.s32.totalorder %s28, 0
      %p168 = por %p166, %p167
      %p169 = scmp.ne.s32.totalorder %s157, %s158
      %p170 = scmp.eq.s32.totalorder %s29, 1
      %p171 = por %p169, %p170
      %p173 = scmp.ne.s32.totalorder %s158, %s172
      %p174 = scmp.eq.s32.totalorder %s29, 0
      %p175 = por %p173, %p174
      %p176 = scmp.le.s32.totalorder 1, %s23
      %p177 = scmp.lt.s32.totalorder %s23, 3
      %p178 = pnand %p176, %p177
      %p179 = pneg %p178
      // Predicated region
      $region9: #{tpu_custom_call.1} parent=5 // pred_check
        _
      $region10: #{tpu_custom_call.1} parent=5 // pred_check_branch
        %181 = sbr.rel (%p178) target = $region12
      $region11: #{tpu_custom_call.1} parent=5 // pred_region
        %s182 = ssub.s32 %s23, 1
        // Predicated region
        $region13: #{tpu_custom_call.1} parent=11 // pred_check
          %p183 = pneg %p84
        $region14: #{tpu_custom_call.1} parent=11 // pred_check_branch
          %185 = sbr.rel (%p183) target = $region16
        $region15: #{tpu_custom_call.1} parent=11 // pred_region
          _
        $region16: #{tpu_custom_call.1} parent=11 // pred_fallthru
          _
        // Predicated region
        $region17: #{tpu_custom_call.1} parent=11 // pred_check
          %p186 = pneg %p105
        $region18: #{tpu_custom_call.1} parent=11 // pred_check_branch
          %188 = sbr.rel (%p186) target = $region20
        $region19: #{tpu_custom_call.1} parent=11 // pred_region
          _
        $region20: #{tpu_custom_call.1} parent=11 // pred_fallthru
          _
        // Predicated region
        $region21: #{tpu_custom_call.1} parent=11 // pred_check
          %p189 = pneg %p126
        $region22: #{tpu_custom_call.1} parent=11 // pred_check_branch
          %191 = sbr.rel (%p189) target = $region24
        $region23: #{tpu_custom_call.1} parent=11 // pred_region
          _
        $region24: #{tpu_custom_call.1} parent=11 // pred_fallthru
          _
        // Predicated region
        $region25: #{tpu_custom_call.1} parent=11 // pred_check
          %p192 = pneg %p147
        $region26: #{tpu_custom_call.1} parent=11 // pred_check_branch
          %194 = sbr.rel (%p192) target = $region28
        $region27: #{tpu_custom_call.1} parent=11 // pred_region
          _
        $region28: #{tpu_custom_call.1} parent=11 // pred_fallthru
          _
      $region12: #{tpu_custom_call.1} parent=5 // pred_fallthru
        _
      %p195 = scmp.lt.s32.totalorder %s23, 2
      // Predicated region
      $region29: #{tpu_custom_call.1} parent=5 // pred_check
        %p196 = pneg %p195
      $region30: #{tpu_custom_call.1} parent=5 // pred_check_branch
        %198 = sbr.rel (%p196) target = $region32
      $region31: #{tpu_custom_call.1} parent=5 // pred_region
        // Predicated region
        $region33: #{tpu_custom_call.1} parent=31 // pred_check
          %p199 = pneg %p57
        $region34: #{tpu_custom_call.1} parent=31 // pred_check_branch
          %201 = sbr.rel (%p199) target = $region36
        $region35: #{tpu_custom_call.1} parent=31 // pred_region
          %p202 = scmp.lt.s32.totalorder %s30, 1
          %s203 = scalar_select %p202, %s30, 1
          %p204 = scmp.lt.s32.totalorder %s31, 0
          %s205 = scalar_select %p204, %s31, 0
          %s206 = sadd.s32 %s205, %s203
          %s207 = smul.addr %s206, 8
          %s208 = scalar_lea.vmem %s2, %s207
        $region36: #{tpu_custom_call.1} parent=31 // pred_fallthru
          _
      $region32: #{tpu_custom_call.1} parent=5 // pred_fallthru
        _
      %p209 = scmp.le.s32.totalorder 1, %s23
      %p210 = scmp.lt.s32.totalorder %s23, 3
      %p211 = pnand %p209, %p210
      %p212 = pneg %p211
      // Predicated region
      $region37: #{tpu_custom_call.1} parent=5 // pred_check
        _
      $region38: #{tpu_custom_call.1} parent=5 // pred_check_branch
        %214 = sbr.rel (%p211) target = $region40
      $region39: #{tpu_custom_call.1} parent=5 // pred_region
        %s215 = ssub.s32 %s23, 1
        %p216 = scmp.lt.s32.totalorder %s32, 1
        %s217 = scalar_select %p216, %s32, 1
        %p218 = scmp.lt.s32.totalorder %s33, 0
        %s219 = scalar_select %p218, %s33, 0
        %s220 = sadd.s32 %s219, %s217
        %s221 = smul.addr %s220, 8
        %s222 = scalar_lea.vmem %s2, %s221
        %p223 = pneg %p63
        %p224 = pneg %p60
        %p225 = pneg %p84
        %p226 = pneg %p81
        %p227 = pneg %p105
        %p228 = pneg %p102
        %p229 = pneg %p126
        %p230 = pneg %p123
        %p231 = pneg %p147
        %p232 = pneg %p144
        %p233 = pneg %p168
        %p234 = pneg %p165
        %p235 = scmp.lt.s32.totalorder %s32, 1
        %s236 = scalar_select %p235, %s32, 1
        %p237 = scmp.lt.s32.totalorder %s33, 0
        %s238 = scalar_select %p237, %s33, 0
        %s239 = sadd.s32 %s238, %s236
        %s240 = smul.addr %s239, 8
        %s241 = scalar_lea.vmem %s2, %s240
        %p242 = scmp.eq.s32.totalorder %s32, 0
        %p243 = scmp.eq.s32.totalorder %s33, 0
        %p244 = pnand %p242, %p243
        %p245 = pneg %p244
        // Predicated region
        $region41: #{tpu_custom_call.1} parent=39 // pred_check
          _
        $region42: #{tpu_custom_call.1} parent=39 // pred_check_branch
          %247 = sbr.rel (%p244) target = $region44
        $region43: #{tpu_custom_call.1} parent=39 // pred_region
          %vm248 = vcmask 130048
          %249 = vst.msk [vmem:[#allocation2] sm:$0xff] %vm248, 0.0
          %vm250 = vcmask 0
          %251 = vst.msk [vmem:[#allocation4] sm:$0x1] %vm250, 0.0
        $region44: #{tpu_custom_call.1} parent=39 // pred_fallthru
          _
        // Predicated region
        $region45: #{tpu_custom_call.1} parent=39 // pred_check
          %p252 = pneg %p243
        $region46: #{tpu_custom_call.1} parent=39 // pred_check_branch
          %254 = sbr.rel (%p252) target = $region48
        $region47: #{tpu_custom_call.1} parent=39 // pred_region
          %vm255 = vcmask 7168
          %256 = vst.msk [vmem:[#allocation3] sm:$0xff] %vm255, 0.0
        $region48: #{tpu_custom_call.1} parent=39 // pred_fallthru
          _
        %v257 = vld [vmem:[%s241] sm:$0xff]
        %v258 = vmul.f32 %v257, 0.5
        %v259 = vtanh.pop %v258
        %v260 = vadd.f32 %v259, 1.0
        %v261 = vmul.f32 %v260, 0.5
        %v262 = vsub.f32 1.0, %v261
        %v263 = vmax.f32 %v261, %v262
        %v264 = vlog2.pop %v263
        %v265 = vmul.f32 %v264, 0.6931472
        %v266 = vsub.f32 0.0, %v265
        %v267 = vmax.f32 %v257, 0.0
        %v268 = vadd.f32 %v267, %v266
        %v269 = vmul.f32 %v268, %v261
        %v270 = vmul.f32 %v269, %v261
        %v271 = vld [vmem:[#allocation2] sm:$0xff]
        %v272 = vadd.f32 %v271, %v270
        %vm273 = vcmask 130048
        %274 = vst.msk [vmem:[#allocation2] sm:$0xff] %vm273, %v272
        %vm275 = vcmask 121856
        %v276 = vsel %vm275, %v257, -inf
        %277 = vmax.xlane.f32.xlu0 %v276
        %v278 = vpop.xlane.xlu0 %277
        %v279 = vld [vmem:[#allocation3] sm:$0xff]
        %vm280 = vcmp.ge.f32.partialorder %v278, %v257
        %v281 = vsel %vm280, 1, 0
        %v282 = vcvt.s32.f32 %v281
        %284 = vrot.lane.b32.xlu0 %v282, 113
        %v285 = vpop.permute.xlu0 %284
        %v287 = vadd.f32 %v279, %v285
        %vm288 = vcmask 7168
        %289 = vst.msk [vmem:[#allocation3] sm:$0xff] %vm288, %v287
        // Predicated region
        $region49: #{tpu_custom_call.1} parent=39 // pred_check
          %p290 = pneg %p243
        $region50: #{tpu_custom_call.1} parent=39 // pred_check_branch
          %292 = sbr.rel (%p290) target = $region52
        $region51: #{tpu_custom_call.1} parent=39 // pred_region
          %v293 = vld [vmem:[#allocation3] sm:$0xff]
          %v294 = vsel %vm288, %v293, 0.0
          %295 = vadd.xlane.f32.xlu0 %v294
          %v296 = vpop.xlane.xlu0 %295
          %v297 = vrot.slane %v296, 4
          %v298 = vadd.f32 %v296, %v297
          %v299 = vrot.slane %v298, 2
          %v300 = vadd.f32 %v298, %v299
          %v301 = vrot.slane %v300, 1
          %v302 = vadd.f32 %v300, %v301
          %s303 = vtos %v302
          %v304 = vstv %s303
          %v305 = vld [vmem:[#allocation4] sm:$0x1]
          %s306 = sld [smem:[#allocation6 + %s32]]
          %v307 = vstv %s306
          %v308 = vsub.f32 %v304, %v307
          %v309 = vand.u32 2147483647, %v308
          %v310 = vadd.f32 %v305, %v309
          %vm311 = vcmask 0
          %312 = vst.msk [vmem:[#allocation4] sm:$0x1] %vm311, %v310
        $region52: #{tpu_custom_call.1} parent=39 // pred_fallthru
          _
        %p313 = scmp.eq.s32.totalorder %s32, 1
        %p314 = pnand %p313, %p243
        %p315 = pneg %p314
        // Predicated region
        $region53: #{tpu_custom_call.1} parent=39 // pred_check
          _
        $region54: #{tpu_custom_call.1} parent=39 // pred_check_branch
          %317 = sbr.rel (%p314) target = $region56
        $region55: #{tpu_custom_call.1} parent=39 // pred_region
          %s318 = sld [smem:[#allocation7]]
          %v319 = vld [vmem:[%s3] sm:$0xff]
          %v320 = vld [vmem:[%s4] sm:$0xff]
          %v321 = vlaneseq
          %v322 = vshrl.u32 %v321, 7
          %vm323 = vcmp.lt.s32.totalorder %v322, 6
          %v324 = vsel %vm323, 1, 0
          %v325 = vcvt.s32.f32 %v324
          %v326 = vlaneseq
          %v327 = vand.u32 %v326, 127
          %v328 = vmul.f32 %v319, 0.5
          %v329 = vtanh.pop %v328
          %v330 = vadd.f32 %v329, 1.0
          %v331 = vmul.f32 %v330, 0.5
          %v332 = vsub.f32 1.0, %v331
          %v333 = vmax.f32 %v331, %v332
          %v334 = vlog2.pop %v333
          %v335 = vmul.f32 %v334, 0.6931472
          %v336 = vsub.f32 0.0, %v335
          %v337 = vmax.f32 %v319, 0.0
          %v338 = vadd.f32 %v337, %v336
          %v339 = vmul.f32 %v338, %v331
          %v340 = vmul.f32 %v339, %v331
          %v341 = vsub.f32 0.0, %v319
          %v342 = vmax.f32 %v341, 0.0
          %v343 = vadd.f32 %v342, %v336
          %v344 = vmul.f32 %v343, %v332
          %v345 = vmul.f32 %v344, %v332
          %346 = vset.pattern.permute.xlu0 0
          %347 = vperm.xlu0 %346, %v320
          %v348 = vpop.permute.xlu0 %347
          %vm349 = vcmp.eq.s32.totalorder %v327, %v348
          %v350 = vsel %vm349, 1, 0
          %v351 = vcvt.s32.f32 %v350
          %v352 = vmul.f32 %v351, %v325
          %v353 = vmul.f32 %v345, 0.25
          %v354 = vmul.f32 %v340, 0.75
          %v355 = vsub.f32 %v353, %v354
          %v356 = vmul.f32 %v352, %v355
          %v357 = vsel %vm273, %v356, 0.0
          %358 = vadd.xlane.f32.xlu0 %v357
          %v359 = vpop.xlane.xlu0 %358
          %v360 = vrot.slane %v359, 4
          %v361 = vadd.f32 %v359, %v360
          %v362 = vrot.slane %v361, 2
          %v363 = vadd.f32 %v361, %v362
          %v364 = vrot.slane %v363, 1
          %v365 = vadd.f32 %v363, %v364
          %s366 = vtos %v365
          %v367 = vstv %s366
          %v368 = vld [vmem:[#allocation2] sm:$0xff]
          %v369 = vsel %vm273, %v368, 0.0
          %370 = vadd.xlane.f32.xlu0 %v369
          %v371 = vpop.xlane.xlu0 %370
          %v372 = vrot.slane %v371, 4
          %v373 = vadd.f32 %v371, %v372
          %v374 = vrot.slane %v373, 2
          %v375 = vadd.f32 %v373, %v374
          %v376 = vrot.slane %v375, 1
          %v377 = vadd.f32 %v375, %v376
          %s378 = vtos %v377
          %v379 = vstv %s378
          %v380 = vmul.f32 %v379, 0.75
          %v381 = vadd.f32 %v380, %v367
          %v382 = vstv %s318
          %v383 = vrcp.pop %v382
          %v384 = vmul.f32 %v382, %v383
          %v385 = vsub.f32 1.0, %v384
          %v386 = vmul.f32 %v383, %v385
          %v387 = vadd.f32 %v383, %v386
          %vm388 = vweird.f32 %v382
          %vm389 = vweird.f32 %v383
          %vm390 = vmor %vm388, %vm389
          %v391 = vsel %vm390, %v383, %v387
          %v392 = vand.u32 2147483647, %v382
          %vm393 = vcmp.eq.f32.partialorder %v392, 8.507059e+37
          %v394 = vand.u32 %v382, 2147483648
          %v395 = vor.u32 1.1754944e-38, %v394
          %v396 = vsel %vm393, %v395, %v391
          %v397 = vmul.f32 %v381, %v396
          %v398 = vsel %vm273, %v319, -inf
          %399 = vmax.xlane.f32.xlu0 %v398
          %v400 = vpop.xlane.xlu0 %399
          %vm401 = vcmp.eq.f32.partialorder %v319, %v400
          %v402 = vsel %vm401, %v327, 16
          %v403 = vsel %vm273, %v402, 2147483647
          %v404 = vand.u32 %v403, 65535
          %v405 = vshra.s32 %v403, 16
          %v406 = vcvt.s32.f32 %v404
          %v407 = vcvt.s32.f32 %v405
          %408 = vmin.xlane.f32.xlu0 %v407
          %v409 = vpop.xlane.xlu0 %408
          %vm410 = vcmp.eq.f32.partialorder %v407, %v409
          %v411 = vsel %vm410, %v406, inf
          %412 = vmin.xlane.f32.xlu0 %v411
          %v413 = vpop.xlane.xlu0 %412
          %v414 = vcvt.f32.s32 %v413
          %v415 = vcvt.f32.s32 %v409
          %v416 = vshll.u32 %v415, 16
          %v417 = vadd.s32 %v416, %v414
          %vm418 = vcmp.eq.s32.totalorder %v417, %v320
          %v419 = vsel %vm418, %v325, 0.0
          %v420 = vsel %vm288, %v419, 0.0
          %421 = vadd.xlane.f32.xlu0 %v420
          %v422 = vpop.xlane.xlu0 %421
          %v423 = vrot.slane %v422, 4
          %v424 = vadd.f32 %v422, %v423
          %v425 = vrot.slane %v424, 2
          %v426 = vadd.f32 %v424, %v425
          %v427 = vrot.slane %v426, 1
          %v428 = vadd.f32 %v426, %v427
          %s429 = vtos %v428
          %v430 = vstv %s429
          %v431 = vmul.f32 %v430, 16.666666
          %v432 = vsub.f32 100.0, %v431
          %v433 = vld [vmem:[#allocation4] sm:$0x1]
          %v434 = vmul.f32 %v433, 0.5
          %v435 = vld [vmem:[%s5] sm:$0xff]
          %v436 = vld [vmem:[%s6] sm:$0xff]
          %v437 = vsub.f32 %v435, %v436
          %v438 = vand.u32 2147483647, %v437
          %vm439 = vcmask 15360
          %v440 = vsel %vm439, %v438, 0.0
          %441 = vadd.xlane.f32.xlu0 %v440
          %v442 = vpop.xlane.xlu0 %441
          %v443 = vrot.slane %v442, 4
          %v444 = vadd.f32 %v442, %v443
          %v445 = vrot.slane %v444, 2
          %v446 = vadd.f32 %v444, %v445
          %v447 = vrot.slane %v446, 1
          %v448 = vadd.f32 %v446, %v447
          %s449 = vtos %v448
          %v450 = vstv %s449
          %v451 = vmul.f32 %v450, %v396
          %vm452 = vcmp.eq.s32.totalorder %v327, 0
          %v453 = vsel %vm452, %v397, 0.0
          %vm454 = vcmp.eq.s32.totalorder %v327, 1
          %v455 = vsel %vm454, %v432, 0.0
          %v456 = vadd.f32 %v453, %v455
          %vm457 = vcmp.eq.s32.totalorder %v327, 2
          %459 = vset.pattern.permute.xlu0 0
          %460 = vperm.xlu0 %459, %v434
          %v461 = vpop.permute.xlu0 %460
          %v463 = vperm.slane %v461, 0
          %v464 = vsel %vm457, %v463, 0.0
          %v465 = vadd.f32 %v456, %v464
          %vm466 = vcmp.eq.s32.totalorder %v327, 3
          %v467 = vsel %vm466, %v451, 0.0
          %v468 = vadd.f32 %v465, %v467
          %469 = vst [vmem:[#allocation8] sm:$0x1] %v468
        $region56: #{tpu_custom_call.1} parent=39 // pred_fallthru
          _
        // Predicated region
        $region57: #{tpu_custom_call.1} parent=39 // pred_check
          %p470 = pneg %p165
        $region58: #{tpu_custom_call.1} parent=39 // pred_check_branch
          %472 = sbr.rel (%p470) target = $region60
        $region59: #{tpu_custom_call.1} parent=39 // pred_region
          %474 = vsyncadd [#allocation9], 0
          %s476 = sshll.u32 [#allocation8], 4
          %s477 = int_to_ptr.vmem [resolvable:$true] %s476
          %s478 = sshll.u32 %s7, 4
          %s479 = int_to_ptr.hbm [resolvable:$true] %s478
          %481 = dma.vmem_to_hbm [thread:$0]  %s477, 16, %s479, [#allocation9]
        $region60: #{tpu_custom_call.1} parent=39 // pred_fallthru
          _
        // Predicated region
        $region61: #{tpu_custom_call.1} parent=39 // pred_check
          %p482 = pneg %p165
        $region62: #{tpu_custom_call.1} parent=39 // pred_check_branch
          %484 = sbr.rel (%p482) target = $region64
        $region63: #{tpu_custom_call.1} parent=39 // pred_region
          %486 = dma.done [#allocation9], 16
        $region64: #{tpu_custom_call.1} parent=39 // pred_fallthru
          _
      $region40: #{tpu_custom_call.1} parent=5 // pred_fallthru
        _
      %p487 = scmp.le.s32.totalorder 2, %s23
      // Predicated region
      $region65: #{tpu_custom_call.1} parent=5 // pred_check
        %p488 = pneg %p487
      $region66: #{tpu_custom_call.1} parent=5 // pred_check_branch
        %490 = sbr.rel (%p488) target = $region68
      $region67: #{tpu_custom_call.1} parent=5 // pred_region
        %s491 = ssub.s32 %s23, 2
      $region68: #{tpu_custom_call.1} parent=5 // pred_fallthru
        _
    $region6: #{tpu_custom_call.1} parent=1 // loop_footer
      %s27 = sadd.s32 1, %s23
    $region7: #{tpu_custom_call.1} parent=1 // loop_footer_branch
      %22 = sbr.rel target = $region3
    $region8: #{tpu_custom_call.1} parent=1 // loop_exit
      _
    %492 = vsyncpa [#allocation9], 1
    %s493 = scalar_lea.sflag [#allocation9], 1
    %494 = vsyncpa %s493, 1

</llo_original>
